<compile_context>
chip_gen: v7x
topology: tpu7x:2x2x1
jax: 0.10.0
libtpu: 0.0.40
codegen_flags: <defaults>
</compile_context>

<pallas_src>
import jax
import jax.numpy as jnp
from jax.experimental import pallas as pl
from jax.experimental.pallas import tpu as pltpu


def _round_up(v, m):
    return ((v + m - 1) // m) * m


def _pick_tile(dim, align, cap):
    """Pad `dim` to a multiple of `align`; return (tile, padded_dim) where `tile`
    is the largest multiple of `align` that divides padded_dim and is <= cap.
    Keeps padding minimal (< align) and guarantees no ragged last tile."""
    padded = _round_up(max(dim, 1), align)
    units = padded // align
    best = 1
    d = 1
    while d * d <= units:
        if units % d == 0:
            for u in (d, units // d):
                if u * align <= cap:
                    best = max(best, u)
        d += 1
    return best * align, padded


def _linear_kernel(x_ref, w_ref, b_ref, o_ref):
    """One (TM, TN) output tile. K is the innermost ('arbitrary') grid axis and
    the output block is resident across it -> accumulate directly into o_ref."""
    k = pl.program_id(2)

    @pl.when(k == 0)
    def _():
        # Seed the resident f32 output block with the bias: no zero-fill and no
        # final bias add / scratch copy needed.
        o_ref[...] = jnp.broadcast_to(b_ref[...], o_ref.shape).astype(o_ref.dtype)

    # x tile (TM, TK) contracted against PyTorch-layout weight tile (TN, TK).
    o_ref[...] += jax.lax.dot_general(
        x_ref[...],
        w_ref[...],
        dimension_numbers=(((1,), (1,)), ((), ())),
        preferred_element_type=jnp.float32,
    ).astype(o_ref.dtype)


def _small_linear_kernel(x_ref, w_ref, b_ref, o_ref):
    """Whole-problem single-shot kernel (no K loop) for tiny layers."""
    o_ref[...] = (
        jax.lax.dot_general(
            x_ref[...],
            w_ref[...],
            dimension_numbers=(((1,), (1,)), ((), ())),
            preferred_element_type=jnp.float32,
        )
        + b_ref[...]
    ).astype(o_ref.dtype)


_SMALL_BYTES = 4 << 20  # whole problem comfortably fits in VMEM -> single shot


def linear_forward(x, weight, bias):
    """x: (B, x_dim), weight: (y_dim, x_dim) (PyTorch layout), bias: (y_dim,)."""
    x = jnp.asarray(x, jnp.float32)
    weight = jnp.asarray(weight, jnp.float32)
    bias = jnp.asarray(bias, jnp.float32)

    B, K = x.shape
    N, K2 = weight.shape
    assert K == K2 and bias.shape == (N,)
    b2 = bias.reshape(1, N)

    # ------------------------ small-problem fast path ------------------------
    total_bytes = (B * K + N * K + B * N + N) * 4
    if total_bytes <= _SMALL_BYTES:
        return pl.pallas_call(
            _small_linear_kernel,
            out_shape=jax.ShapeDtypeStruct((B, N), jnp.float32),
            grid=(1,),
            in_specs=[
                pl.BlockSpec((B, K), lambda i: (0, 0)),   # whole-array blocks are
                pl.BlockSpec((N, K), lambda i: (0, 0)),   # exempt from (8,128)
                pl.BlockSpec((1, N), lambda i: (0, 0)),
            ],
            out_specs=pl.BlockSpec((B, N), lambda i: (0, 0)),
        )(x, weight, b2)

    # ------------------------------ tiled path -------------------------------
    TM, Bp = _pick_tile(B, 8, 512)      # sublane-aligned rows
    TN, Np = _pick_tile(N, 128, 512)    # lane-dense output columns
    TK, Kp = _pick_tile(K, 128, 2048)   # contraction chunk

    # Expose >= 2 blocks on a "parallel" axis so both v7x TensorCores get work
    # (harmless no-op on single-TC v5e/v6e).
    if Bp // TM == 1 and Np // TN == 1:
        if TN % 256 == 0:
            TN //= 2          # prefer splitting N: weight tiles still fetched once
        elif TM % 16 == 0:
            TM //= 2

    # Minimal zero padding (< 8 rows / < 128 cols); zeros along K contribute
    # nothing to the dot product and padded output columns are sliced off.
    if (Bp, Kp) != (B, K):
        x = jnp.pad(x, ((0, Bp - B), (0, Kp - K)))
    if (Np, Kp) != (N, K):
        weight = jnp.pad(weight, ((0, Np - N), (0, Kp - K)))
    if Np != N:
        b2 = jnp.pad(b2, ((0, 0), (0, Np - N)))

    grid = (Bp // TM, Np // TN, Kp // TK)

    # Double-buffered x / w / bias tiles + double-buffered resident output tile.
    vmem_bytes = (2 * (TM * TK + TN * TK + TN) + 2 * TM * TN) * 4 + (8 << 20)
    vmem_limit = int(min(max(vmem_bytes, 16 << 20), 48 << 20))  # safe on v7x 64 MiB

    out = pl.pallas_call(
        _linear_kernel,
        out_shape=jax.ShapeDtypeStruct((Bp, Np), jnp.float32),
        grid_spec=pltpu.PrefetchScalarGridSpec(
            num_scalar_prefetch=0,
            grid=grid,
            in_specs=[
                pl.BlockSpec((TM, TK), lambda i, j, k: (i, k)),   # x
                pl.BlockSpec((TN, TK), lambda i, j, k: (j, k)),   # weight (N, K)
                pl.BlockSpec((1, TN), lambda i, j, k: (0, j)),    # bias, K-invariant
            ],
            out_specs=pl.BlockSpec((TM, TN), lambda i, j, k: (i, j)),
        ),
        compiler_params=pltpu.CompilerParams(
            dimension_semantics=("parallel", "parallel", "arbitrary"),
            vmem_limit_bytes=vmem_limit,
        ),
    )(x, weight, b2)

    if (Bp, Np) != (B, N):
        out = out[:B, :N]
    return out


if __name__ == "__main__":
    key = jax.random.PRNGKey(0)
    kx, kw, kb = jax.random.split(key, 3)

    # --- small shapes consistent with nn.Linear(x_dim, y_dim): fast path ---
    batch, x_dim, y_dim = 16, 32, 8
    x = jax.random.normal(kx, (batch, x_dim), dtype=jnp.float32)
    bound = 1.0 / (x_dim ** 0.5)                       # PyTorch-style init bound
    weight = jax.random.uniform(kw, (y_dim, x_dim), jnp.float32, -bound, bound)
    bias = jax.random.uniform(kb, (y_dim,), jnp.float32, -bound, bound)

    out = linear_forward(x, weight, bias)
    jax.block_until_ready(out)
    ref = x @ weight.T + bias
    assert out.shape == (batch, y_dim)
    assert jnp.allclose(out, ref, atol=1e-5, rtol=1e-5)

    # --- larger shapes exercising the tiled / K-accumulating path ---
    B2, K2, N2 = 512, 3000, 768
    x2 = jax.random.normal(kx, (B2, K2), dtype=jnp.float32)
    w2 = jax.random.uniform(kw, (N2, K2), jnp.float32, -0.05, 0.05)
    b2 = jax.random.uniform(kb, (N2,), jnp.float32, -0.05, 0.05)

    out2 = linear_forward(x2, w2, b2)
    jax.block_until_ready(out2)
    ref2 = x2 @ w2.T + b2
    assert out2.shape == (B2, N2)
    assert jnp.allclose(out2, ref2, atol=1e-3, rtol=1e-3)

    print("KERNEL_OK")
</pallas_src>

<mosaic_0001>
module attributes {stable_mosaic.version = 11 : i64} {
  func.func @_small_linear_kernel(%arg0: i32, %arg1: memref<16x32xf32, #tpu.memory_space<vmem>>, %arg2: memref<8x32xf32, #tpu.memory_space<vmem>>, %arg3: memref<1x8xf32, #tpu.memory_space<vmem>>, %arg4: memref<16x8xf32, #tpu.memory_space<vmem>>) attributes {dimension_semantics = [#tpu.dimension_semantics<arbitrary>], iteration_bounds = array<i64: 1>, scalar_prefetch = 0 : i64, scratch_operands = 0 : i64, tpu.core_type = #tpu.core_type<tc>, window_params = [{pipeline_mode = #tpu.pipeline_mode<synchronous>, transform_indices = @transform_0, window_bounds = array<i64: 16, 32>}, {pipeline_mode = #tpu.pipeline_mode<synchronous>, transform_indices = @transform_1, window_bounds = array<i64: 8, 32>}, {pipeline_mode = #tpu.pipeline_mode<synchronous>, transform_indices = @transform_2, window_bounds = array<i64: 1, 8>}, {pipeline_mode = #tpu.pipeline_mode<synchronous>, transform_indices = @transform_3, window_bounds = array<i64: 16, 8>}]} {
    %c0 = arith.constant 0 : index
    %c0_0 = arith.constant 0 : index
    %0 = vector.load %arg1[%c0, %c0_0] : memref<16x32xf32, #tpu.memory_space<vmem>>, vector<16x32xf32>
    %c0_1 = arith.constant 0 : index
    %c0_2 = arith.constant 0 : index
    %1 = vector.load %arg2[%c0_1, %c0_2] : memref<8x32xf32, #tpu.memory_space<vmem>>, vector<8x32xf32>
    %cst = arith.constant dense<0.000000e+00> : vector<16x8xf32>
    %2 = tpu.matmul %0, %1, %cst {dimension_numbers = #tpu.dot_dimension_numbers<[1], [1], [0], [0], [0, 0, 1, 0], [], []>} : vector<16x32xf32>, vector<8x32xf32>, vector<16x8xf32> -> vector<16x8xf32>
    %c0_3 = arith.constant 0 : index
    %c0_4 = arith.constant 0 : index
    %3 = vector.load %arg3[%c0_3, %c0_4] : memref<1x8xf32, #tpu.memory_space<vmem>>, vector<1x8xf32>
    %4 = vector.broadcast %3 : vector<1x8xf32> to vector<16x8xf32>
    %5 = arith.addf %2, %4 : vector<16x8xf32>
    %c0_5 = arith.constant 0 : index
    %c0_6 = arith.constant 0 : index
    %6 = vector.load %arg4[%c0_5, %c0_6] : memref<16x8xf32, #tpu.memory_space<vmem>>, vector<16x8xf32>
    tpu.vector_store %arg4[%c0_5, %c0_6], %5 {strides = array<i32>} : memref<16x8xf32, #tpu.memory_space<vmem>>, vector<16x8xf32>,
    return
  }
  func.func @transform_0(%arg0: i32) -> (i32, i32) {
    %c0_i32 = arith.constant 0 : i32
    %c0_i32_0 = arith.constant 0 : i32
    %c0_i32_1 = arith.constant 0 : i32
    return %c0_i32, %c0_i32_0 : i32, i32
  }
  func.func @transform_1(%arg0: i32) -> (i32, i32) {
    %c0_i32 = arith.constant 0 : i32
    %c0_i32_0 = arith.constant 0 : i32
    %c0_i32_1 = arith.constant 0 : i32
    return %c0_i32, %c0_i32_0 : i32, i32
  }
  func.func @transform_2(%arg0: i32) -> (i32, i32) {
    %c0_i32 = arith.constant 0 : i32
    %c0_i32_0 = arith.constant 0 : i32
    %c0_i32_1 = arith.constant 0 : i32
    return %c0_i32, %c0_i32_0 : i32, i32
  }
  func.func @transform_3(%arg0: i32) -> (i32, i32) {
    %c0_i32 = arith.constant 0 : i32
    %c0_i32_0 = arith.constant 0 : i32
    %c0_i32_1 = arith.constant 0 : i32
    return %c0_i32, %c0_i32_0 : i32, i32
  }
}

</mosaic_0001>

<llo_original>
// kernel: tpu_custom_call.1
$region0: #{tpu_custom_call.1}
  #allocation0 [shape = 'u32[]', space=smem, size = 0x4, offset = 0x4, fixed_abs, tag = 'smem constant byte address 0x4 - core index']
  #allocation1 [shape = 'u32[144,128]{1,0:T(1,128)}', space=vmem, size = 0x12000, scoped, tag = 'internal scratch']
  %s0 = inlined_call_operand.hbm [shape: f32[16,32], index: 0, kind: input, shape index: {}]
  %s1 = inlined_call_operand.hbm [shape: f32[8,32], index: 1, kind: input, shape index: {}]
  %s2 = inlined_call_operand.vmem [shape: f32[1,8], index: 2, kind: input, shape index: {}]
  %s3 = inlined_call_operand.vmem [shape: f32[16,8], index: 3, kind: output, shape index: {}]
  %s4 = sld [smem:[#allocation0]]
  $region30: #{tpu_custom_call.1} parent=0
    _
  %s6 = ssub.s32 1, %s4
  %s7 = scalar_select 0, %s6, %s4
  $region1: #{tpu_custom_call.1} parent=0
    #allocation2 [shape = 'u8[8192]{0}', space=vmem, size = 0x2000, scoped, tag = 'input window, operand 0, single buffered']
    #allocation3 [shape = 's32[1]{0}', space=sflag, size = 0x4, scoped, tag = 'scoped memory for tpu_custom_call.1']
    #allocation4 [shape = 'u8[4096]{0}', space=vmem, size = 0x1000, scoped, tag = 'input window, operand 1, single buffered']
    #allocation5 [shape = 's32[1]{0}', space=sflag, size = 0x4, scoped, tag = 'scoped memory for tpu_custom_call.1']
    %8 = vsyncpa [#allocation3], 0
    %9 = vsyncpa [#allocation5], 0
    // Predicated region
    $region2: #{tpu_custom_call.1} parent=1 // pred_check
      _
    $region3: #{tpu_custom_call.1} parent=1 // pred_check_branch
      %11 = sbr.rel (0) target = $region5
    $region4: #{tpu_custom_call.1} parent=1 // pred_region
      %s13 = ssub.s32 256, 256
      %14 = vsyncadd [#allocation3], %s13
      %s15 = sshll.u32 [#allocation2], 4
      %s16 = int_to_ptr.vmem [resolvable:$true] %s15
      %21 = dma.hbm_to_vmem [thread:$0]  %s0, 256, %s16, [#allocation3], 128, 128, 8
    $region5: #{tpu_custom_call.1} parent=1 // pred_fallthru
      _
    // Predicated region
    $region6: #{tpu_custom_call.1} parent=1 // pred_check
      _
    $region7: #{tpu_custom_call.1} parent=1 // pred_check_branch
      %23 = sbr.rel (0) target = $region9
    $region8: #{tpu_custom_call.1} parent=1 // pred_region
      %s25 = ssub.s32 128, 128
      %26 = vsyncadd [#allocation5], %s25
      %s28 = sshll.u32 [#allocation4], 4
      %s29 = int_to_ptr.vmem [resolvable:$true] %s28
      %31 = dma.hbm_to_vmem [thread:$0]  %s1, 128, %s29, [#allocation5]
    $region9: #{tpu_custom_call.1} parent=1 // pred_fallthru
      _
    // Predicated region
    $region10: #{tpu_custom_call.1} parent=1 // pred_check
      _
    $region11: #{tpu_custom_call.1} parent=1 // pred_check_branch
      %33 = sbr.rel (0) target = $region13
    $region12: #{tpu_custom_call.1} parent=1 // pred_region
      _
    $region13: #{tpu_custom_call.1} parent=1 // pred_fallthru
      _
    // Predicated region
    $region14: #{tpu_custom_call.1} parent=1 // pred_check
      _
    $region15: #{tpu_custom_call.1} parent=1 // pred_check_branch
      %35 = sbr.rel (0) target = $region17
    $region16: #{tpu_custom_call.1} parent=1 // pred_region
      %36 = dma.done [#allocation3], 256
    $region17: #{tpu_custom_call.1} parent=1 // pred_fallthru
      _
    // Predicated region
    $region18: #{tpu_custom_call.1} parent=1 // pred_check
      _
    $region19: #{tpu_custom_call.1} parent=1 // pred_check_branch
      %38 = sbr.rel (0) target = $region21
    $region20: #{tpu_custom_call.1} parent=1 // pred_region
      %39 = dma.done [#allocation5], 128
    $region21: #{tpu_custom_call.1} parent=1 // pred_fallthru
      _
    %v40 = vld [vmem:[#allocation2] sm:$0xff]
    %v41 = vld [vmem:[#allocation2 + $0x8] sm:$0xff]
    %v42 = vld [vmem:[#allocation4] sm:$0xff]
    %v43 = vld [vmem:[%s2] sm:$0x1]
    %v45 = vlaneseq
    %v46 = vshrl.u32 %v45, 7
    %v47 = vsub.s32 0, %v46
    %v48 = vrot.slane %v43, %v47
    %vm50 = vcmask 261120
    %v52 = vsel %vm50, %v40, 0
    %v55 = vsel %vm50, %v41, 0
    %v58 = vsel %vm50, %v42, 0
    %60 = vmatprep.subr.mxu0 0.0
    %61 = vmatpush1.xpose.msra.mxu0 %v58
    %62 = vmatprep.subr.mxu0 0.0
    %63 = vmatpush1.xpose.msra.mxu0 0.0
    %64 = vmatprep.subr.mxu0 0.0
    %65 = vmatpush1.xpose.msra.mxu0 0.0
    %66 = vmatprep.subr.mxu0 0.0
    %67 = vmatpush1.xpose.msra.mxu0 0.0
    %68 = vmatprep.subr.mxu0 0.0
    %69 = vmatpush1.xpose.msra.mxu0 0.0
    %70 = vmatprep.subr.mxu0 0.0
    %71 = vmatpush1.xpose.msra.mxu0 0.0
    %72 = vmatprep.subr.mxu0 0.0
    %73 = vmatpush1.xpose.msra.mxu0 0.0
    %74 = vmatprep.subr.mxu0 0.0
    %75 = vmatpush1.xpose.msra.mxu0 0.0
    %76 = vmatprep.subr.mxu0 0.0
    %77 = vmatpush1.xpose.msra.mxu0 0.0
    %78 = vmatprep.subr.mxu0 0.0
    %79 = vmatpush1.xpose.msra.mxu0 0.0
    %80 = vmatprep.subr.mxu0 0.0
    %81 = vmatpush1.xpose.msra.mxu0 0.0
    %82 = vmatprep.subr.mxu0 0.0
    %83 = vmatpush1.xpose.msra.mxu0 0.0
    %84 = vmatprep.subr.mxu0 0.0
    %85 = vmatpush1.xpose.msra.mxu0 0.0
    %86 = vmatprep.subr.mxu0 0.0
    %87 = vmatpush1.xpose.msra.mxu0 0.0
    %88 = vmatprep.subr.mxu0 0.0
    %89 = vmatpush1.xpose.msra.mxu0 0.0
    %90 = vmatprep.subr.mxu0 0.0
    %91 = vmatpush1.xpose.msra.mxu0 0.0
    %92 = vmatprep.subr.mxu0 0.0
    %93 = vmatpush1.xpose.msra.mxu0 0.0
    %94 = vmatprep.subr.mxu0 0.0
    %95 = vmatpush1.xpose.msra.mxu0 0.0
    %96 = vmatprep.subr.mxu0 0.0
    %97 = vmatpush1.xpose.msra.mxu0 0.0
    %98 = vmatprep.subr.mxu0 0.0
    %99 = vmatpush1.xpose.msra.mxu0 0.0
    %100 = vmatprep.subr.mxu0 0.0
    %101 = vmatpush1.xpose.msra.mxu0 0.0
    %102 = vmatprep.subr.mxu0 0.0
    %103 = vmatpush1.xpose.msra.mxu0 0.0
    %104 = vmatprep.subr.mxu0 0.0
    %105 = vmatpush1.xpose.msra.mxu0 0.0
    %106 = vmatprep.subr.mxu0 0.0
    %107 = vmatpush1.xpose.msra.mxu0 0.0
    %108 = vmatprep.subr.mxu0 0.0
    %109 = vmatpush1.xpose.msra.mxu0 0.0
    %110 = vmatprep.subr.mxu0 0.0
    %111 = vmatpush1.xpose.msra.mxu0 0.0
    %112 = vmatprep.subr.mxu0 0.0
    %113 = vmatpush1.xpose.msra.mxu0 0.0
    %114 = vmatprep.subr.mxu0 0.0
    %115 = vmatpush1.xpose.msra.mxu0 0.0
    %116 = vmatprep.subr.mxu0 0.0
    %117 = vmatpush1.xpose.msra.mxu0 0.0
    %118 = vmatprep.subr.mxu0 0.0
    %119 = vmatpush1.xpose.msra.mxu0 0.0
    %120 = vmatprep.subr.mxu0 0.0
    %121 = vmatpush1.xpose.msra.mxu0 0.0
    %122 = vmatprep.subr.mxu0 0.0
    %123 = vmatpush1.xpose.msra.mxu0 0.0
    %124 = vmatprep.mubr.f32.mxu0 0.0
    %125 = vmatmul.mubr.f32.gmra.mrb[0].mxu0 %v52
    %v126 = vpop.f32.mrb[0].mxu0
    %v127 = vadd.f32 %v48, %v126
    %v128 = vpop.f32.mrb[0].mxu0
    %129 = vmatprep.mubr.f32.mxu0 0.0
    %130 = vmatmul.mubr.f32.gmra.mrb[0].mxu0 %v55
    %v131 = vpop.f32.mrb[0].mxu0
    %v132 = vadd.f32 %v48, %v131
    %v133 = vpop.f32.mrb[0].mxu0
    %134 = vdwg.mxu0
    %vm135 = vcmask 64512
    %136 = vst.msk [vmem:[%s3] sm:$0xff] %vm135, %v127
    %137 = vst.msk [vmem:[%s3 + $0x8] sm:$0xff] %vm135, %v132
    // Predicated region
    $region22: #{tpu_custom_call.1} parent=1 // pred_check
      _
    $region23: #{tpu_custom_call.1} parent=1 // pred_check_branch
      %139 = sbr.rel (0) target = $region25
    $region24: #{tpu_custom_call.1} parent=1 // pred_region
      _
    $region25: #{tpu_custom_call.1} parent=1 // pred_fallthru
      _
    // Predicated region
    $region26: #{tpu_custom_call.1} parent=1 // pred_check
      _
    $region27: #{tpu_custom_call.1} parent=1 // pred_check_branch
      %141 = sbr.rel (0) target = $region29
    $region28: #{tpu_custom_call.1} parent=1 // pred_region
      _
    $region29: #{tpu_custom_call.1} parent=1 // pred_fallthru
      _
    %142 = vsyncpa [#allocation3], 1
    %143 = vsyncpa [#allocation5], 1

</llo_original>
